<compile_context>
chip_gen: v6e
topology: v6e:2x2x1
jax: 0.10.0
libtpu: 0.0.40
codegen_flags: <defaults>
</compile_context>

<pallas_src>
import jax
import jax.numpy as jnp
from jax import lax
from jax.experimental import pallas as pl
from jax.experimental.pallas import tpu as pltpu


# Flipped to [False] at runtime if the installed JAX rejects pl.Buffered(1)
# on a BlockSpec (compile safety first; weights are small so this is a minor
# VMEM optimization, not a correctness concern).
_SINGLE_BUFFER_CONSTS = [True]


# ---------------------------------------------------------------------------
# Kernel body
# ---------------------------------------------------------------------------
def _make_adapter_kernel(hidden, out_chunk):
    """Build the fused kernel.

    out_chunk=None -> materialize the full f32 (tm, hidden) 'up' intermediate.
    out_chunk=C    -> chunk matmul2 + bias + cast + store over `hidden` in
                      C-lane slices (bounds the f32 intermediate to tm*C).
    """

    def kernel(x_ref, w1_ref, b1_ref, w2_ref, b2_ref, o_ref):
        # x_ref:  (tm, hidden)
        # w1_ref: (hidden, adapter)   b1_ref: (1, adapter)
        # w2_ref: (adapter, hidden)   b2_ref: (1, hidden)   (lane-dense output)
        x = x_ref[...]
        # down_proj + bias + ReLU  (MXU matmul, f32 accumulation, VPU max)
        down = jnp.dot(x, w1_ref[...], preferred_element_type=jnp.float32)
        down = jnp.maximum(down + b1_ref[...], 0.0).astype(w2_ref.dtype)

        if out_chunk is None:
            up = jnp.dot(down, w2_ref[...], preferred_element_type=jnp.float32)
            o_ref[...] = (up + b2_ref[...]).astype(o_ref.dtype)
        else:
            n_chunks = hidden // out_chunk

            def body(c, carry):
                off = pl.multiple_of(c * out_chunk, out_chunk)
                up = jnp.dot(down, w2_ref[:, pl.ds(off, out_chunk)],
                             preferred_element_type=jnp.float32)
                o_ref[:, pl.ds(off, out_chunk)] = (
                    up + b2_ref[:, pl.ds(off, out_chunk)]).astype(o_ref.dtype)
                return carry

            lax.fori_loop(0, n_chunks, body, 0, unroll=True)

    return kernel


# ---------------------------------------------------------------------------
# Sizing helpers
# ---------------------------------------------------------------------------
def _tpu_generation():
    """(physical VMEM bytes, multi_core) with safe fallbacks."""
    vmem = 128 << 20
    try:
        info = pltpu.get_tpu_info()
        v = int(getattr(info, "vmem_capacity_bytes", 0) or 0)
        if v > 0:
            vmem = v
    except Exception:
        pass
    # v7x: 64 MiB VMEM per TC and 2 TCs/chip.  v5e/v6e: 128 MiB, single TC.
    multi_core = vmem <= (96 << 20)
    return vmem, multi_core


def _vmem_estimate_bytes(tm, hidden, adapter, act_isz, par_isz, out_chunk):
    act = 2 * (2 * tm * hidden * act_isz)                       # x + out, double-buffered
    wts = (2 * hidden * adapter + adapter + hidden) * par_isz   # constants, single-buffered
    inter = tm * adapter * 4 + tm * (out_chunk or hidden) * 4   # f32 intermediates
    return act + wts + inter


# ---------------------------------------------------------------------------
# Public wrapper
# ---------------------------------------------------------------------------
def prepare_adapter_params(w1, b1, w2, b2):
    """One-time layout fix, hoisted out of the hot path.

    nn.Linear stores (out_features, in_features); the kernel wants x @ W^T, so
    pre-transpose once:  w1t: (hidden, adapter),  w2t: (adapter, hidden).
    """
    adapter, hidden = w1.shape
    return (jnp.asarray(w1).T, jnp.asarray(b1).reshape(1, adapter),
            jnp.asarray(w2).T, jnp.asarray(b2).reshape(1, hidden))


def adapter_forward(x, w1t, b1_2d, w2t, b2_2d, *, tm=1024):
    """Fused adapter forward: relu(x @ W1^T + b1) @ W2^T + b2.

    x: (..., hidden); params as produced by prepare_adapter_params.
    Returns an array with x's shape and dtype.
    """
    orig_shape = x.shape
    hidden = orig_shape[-1]
    adapter = w1t.shape[1]
    x2d = x.reshape(-1, hidden)
    rows = x2d.shape[0]

    act_isz = jnp.dtype(x.dtype).itemsize
    par_isz = jnp.dtype(w1t.dtype).itemsize
    out_chunk = 512 if (hidden >= 1024 and hidden % 512 == 0) else None

    phys_vmem, multi_core = _tpu_generation()
    if phys_vmem >= (96 << 20):          # v5e / v6e: 128 MiB physical, 1 TC
        tile_budget = 96 << 20
        limit_cap = 100 << 20
    else:                                # v7x: 64 MiB physical per TC, 2 TCs
        tile_budget = 40 << 20
        limit_cap = 48 << 20

    # ---- Row-tile selection -------------------------------------------------
    sub = 16 if act_isz < 4 else 8       # bf16 packs 16 rows per vreg

    def _round_tile(n):
        if n >= 128:
            return (n // 128) * 128      # full MXU M-passes, clean (8,128) tiles
        return max(sub, (n // sub) * sub)

    rows_up = ((rows + sub - 1) // sub) * sub
    tm_eff = _round_tile(max(sub, min(tm, rows_up)))
    while tm_eff > sub and _vmem_estimate_bytes(
            tm_eff, hidden, adapter, act_isz, par_isz, out_chunk) > tile_budget:
        nxt = _round_tile(max(tm_eff // 2, sub))
        if nxt >= tm_eff:
            break
        tm_eff = nxt

    if multi_core:
        # v7x only: keep >=2 grid steps and prefer an EVEN step count so the
        # ("parallel",) axis balances across the two TensorCores.
        def _steps(t):
            return pl.cdiv(rows, t)

        while tm_eff > sub and (_steps(tm_eff) < 2 or
                                (_steps(tm_eff) % 2 == 1 and _steps(tm_eff) < 8)):
            nxt = _round_tile(max(tm_eff // 2, sub))
            if nxt >= tm_eff:
                break
            tm_eff = nxt

    grid_m = pl.cdiv(rows, tm_eff)
    padded_rows = grid_m * tm_eff
    if padded_rows != rows:
        x2d = jnp.pad(x2d, ((0, padded_rows - rows), (0, 0)))

    est = _vmem_estimate_bytes(tm_eff, hidden, adapter, act_isz, par_isz, out_chunk)
    cp_kwargs = dict(dimension_semantics=("parallel",))
    if est > 12 * (1 << 20):             # above v5e's 16 MiB default scoped VMEM
        limit = int(min(est * 1.5, limit_cap))
        if limit < est:
            limit = int(est) + (4 << 20)
        cp_kwargs["vmem_limit_bytes"] = limit

    kernel = _make_adapter_kernel(hidden, out_chunk)

    def _call(single_buffer_consts):
        # Grid-constant operands: DMA'd once; single-buffer them to halve
        # their VMEM footprint when the installed JAX supports it.
        const_kw = ({"pipeline_mode": pl.Buffered(1)}
                    if single_buffer_consts else {})
        return pl.pallas_call(
            kernel,
            out_shape=jax.ShapeDtypeStruct((padded_rows, hidden), x.dtype),
            grid_spec=pltpu.PrefetchScalarGridSpec(
                num_scalar_prefetch=0,
                grid=(grid_m,),
                in_specs=[
                    pl.BlockSpec((tm_eff, hidden), lambda i: (i, 0)),            # x tile
                    pl.BlockSpec((hidden, adapter), lambda i: (0, 0), **const_kw),  # W1^T
                    pl.BlockSpec((1, adapter), lambda i: (0, 0), **const_kw),       # b1
                    pl.BlockSpec((adapter, hidden), lambda i: (0, 0), **const_kw),  # W2^T
                    pl.BlockSpec((1, hidden), lambda i: (0, 0), **const_kw),        # b2
                ],
                out_specs=pl.BlockSpec((tm_eff, hidden), lambda i: (i, 0)),
            ),
            compiler_params=pltpu.CompilerParams(**cp_kwargs),
        )(x2d, w1t, b1_2d, w2t, b2_2d)

    if _SINGLE_BUFFER_CONSTS[0]:
        try:
            out = _call(True)
        except Exception:
            _SINGLE_BUFFER_CONSTS[0] = False
            out = _call(False)
    else:
        out = _call(False)

    if padded_rows != rows:
        out = out[:rows]
    return out.reshape(orig_shape)


def adapter_apply(x, w1, b1, w2, b2, **kw):
    """Convenience wrapper taking raw nn.Linear-layout params (prefer calling
    prepare_adapter_params once and adapter_forward in the hot path)."""
    return adapter_forward(x, *prepare_adapter_params(w1, b1, w2, b2), **kw)


def init_adapter_params(key, hidden_size, adapter_size=64, dtype=jnp.float32):
    """Deterministic init matching nn.Linear default ranges U[-1/sqrt(fan_in), +]."""
    k1, k2, k3, k4 = jax.random.split(key, 4)
    lim1 = 1.0 / jnp.sqrt(hidden_size)
    lim2 = 1.0 / jnp.sqrt(adapter_size)
    w1 = jax.random.uniform(k1, (adapter_size, hidden_size), dtype, -lim1, lim1)
    b1 = jax.random.uniform(k2, (adapter_size,), dtype, -lim1, lim1)
    w2 = jax.random.uniform(k3, (hidden_size, adapter_size), dtype, -lim2, lim2)
    b2 = jax.random.uniform(k4, (hidden_size,), dtype, -lim2, lim2)
    return w1, b1, w2, b2


if __name__ == "__main__":
    batch, seq, hidden, adapter = 2, 8, 32, 64

    key = jax.random.PRNGKey(0)
    kx, kp = jax.random.split(key)
    x = jax.random.normal(kx, (batch, seq, hidden), jnp.float32)
    w1, b1, w2, b2 = init_adapter_params(kp, hidden, adapter)
    params = prepare_adapter_params(w1, b1, w2, b2)   # one-time layout fix

    # Pure-JAX reference (matches the PyTorch module exactly).
    ref = jnp.maximum(x @ w1.T + b1, 0.0) @ w2.T + b2

    out = jax.block_until_ready(adapter_forward(x, *params))
    assert out.shape == x.shape and out.dtype == x.dtype
    assert jnp.allclose(out, ref, atol=1e-3, rtol=1e-3)

    # Non-divisible row count exercises the cdiv grid + wrapper padding path.
    x_odd = jax.random.normal(kx, (3, 5, hidden), jnp.float32)
    ref_odd = jnp.maximum(x_odd @ w1.T + b1, 0.0) @ w2.T + b2
    out_odd = jax.block_until_ready(adapter_forward(x_odd, *params))
    assert out_odd.shape == x_odd.shape
    assert jnp.allclose(out_odd, ref_odd, atol=1e-3, rtol=1e-3)

    # bf16 activations/weights (f32 MXU accumulation inside the kernel).
    xb = x.astype(jnp.bfloat16)
    params_b = tuple(p.astype(jnp.bfloat16) for p in params)
    out_bf = jax.block_until_ready(adapter_forward(xb, *params_b))
    assert out_bf.dtype == jnp.bfloat16
    assert jnp.allclose(out_bf.astype(jnp.float32), ref, atol=2e-1, rtol=5e-2)

    # Larger hidden exercises the chunked second-matmul/store path (512 lanes).
    hidden2 = 1024
    x2 = jax.random.normal(kx, (batch, seq, hidden2), jnp.float32)
    w1c, b1c, w2c, b2c = init_adapter_params(kp, hidden2, adapter)
    params2 = prepare_adapter_params(w1c, b1c, w2c, b2c)
    ref2 = jnp.maximum(x2 @ w1c.T + b1c, 0.0) @ w2c.T + b2c
    out2 = jax.block_until_ready(adapter_forward(x2, *params2))
    assert out2.shape == x2.shape
    assert jnp.allclose(out2, ref2, atol=5e-3, rtol=5e-3)

    print("KERNEL_OK")
</pallas_src>

<mosaic_0001>
module attributes {stable_mosaic.version = 11 : i64} {
  func.func @kernel(%arg0: i32, %arg1: memref<16x32xf32, #tpu.memory_space<vmem>>, %arg2: memref<32x64xf32, #tpu.memory_space<vmem>>, %arg3: memref<1x64xf32, #tpu.memory_space<vmem>>, %arg4: memref<64x32xf32, #tpu.memory_space<vmem>>, %arg5: memref<1x32xf32, #tpu.memory_space<vmem>>, %arg6: memref<16x32xf32, #tpu.memory_space<vmem>>) attributes {dimension_semantics = [#tpu.dimension_semantics<parallel>], iteration_bounds = array<i64: 1>, scalar_prefetch = 0 : i64, scratch_operands = 0 : i64, tpu.core_type = #tpu.core_type<tc>, window_params = [{transform_indices = @transform_0, window_bounds = array<i64: 16, 32>}, {pipeline_mode = #tpu.pipeline_mode<synchronous>, transform_indices = @transform_1, window_bounds = array<i64: 32, 64>}, {pipeline_mode = #tpu.pipeline_mode<synchronous>, transform_indices = @transform_2, window_bounds = array<i64: 1, 64>}, {pipeline_mode = #tpu.pipeline_mode<synchronous>, transform_indices = @transform_3, window_bounds = array<i64: 64, 32>}, {pipeline_mode = #tpu.pipeline_mode<synchronous>, transform_indices = @transform_4, window_bounds = array<i64: 1, 32>}, {transform_indices = @transform_5, window_bounds = array<i64: 16, 32>}]} {
    %c0 = arith.constant 0 : index
    %c0_0 = arith.constant 0 : index
    %0 = vector.load %arg1[%c0, %c0_0] : memref<16x32xf32, #tpu.memory_space<vmem>>, vector<16x32xf32>
    %c0_1 = arith.constant 0 : index
    %c0_2 = arith.constant 0 : index
    %1 = vector.load %arg2[%c0_1, %c0_2] : memref<32x64xf32, #tpu.memory_space<vmem>>, vector<32x64xf32>
    %cst = arith.constant dense<0.000000e+00> : vector<16x64xf32>
    %2 = tpu.matmul %0, %1, %cst {dimension_numbers = #tpu.dot_dimension_numbers<[1], [0], [0], [1], [0, 0, 1, 1], [], []>} : vector<16x32xf32>, vector<32x64xf32>, vector<16x64xf32> -> vector<16x64xf32>
    %c0_3 = arith.constant 0 : index
    %c0_4 = arith.constant 0 : index
    %3 = vector.load %arg3[%c0_3, %c0_4] : memref<1x64xf32, #tpu.memory_space<vmem>>, vector<1x64xf32>
    %4 = vector.broadcast %3 : vector<1x64xf32> to vector<16x64xf32>
    %5 = arith.addf %2, %4 : vector<16x64xf32>
    %cst_5 = arith.constant 0.000000e+00 : f32
    %6 = vector.broadcast %cst_5 : f32 to vector<16x64xf32>
    %7 = arith.maximumf %5, %6 : vector<16x64xf32>
    %c0_6 = arith.constant 0 : index
    %c0_7 = arith.constant 0 : index
    %8 = vector.load %arg4[%c0_6, %c0_7] : memref<64x32xf32, #tpu.memory_space<vmem>>, vector<64x32xf32>
    %cst_8 = arith.constant dense<0.000000e+00> : vector<16x32xf32>
    %9 = tpu.matmul %7, %8, %cst_8 {dimension_numbers = #tpu.dot_dimension_numbers<[1], [0], [0], [1], [0, 0, 1, 1], [], []>} : vector<16x64xf32>, vector<64x32xf32>, vector<16x32xf32> -> vector<16x32xf32>
    %c0_9 = arith.constant 0 : index
    %c0_10 = arith.constant 0 : index
    %10 = vector.load %arg5[%c0_9, %c0_10] : memref<1x32xf32, #tpu.memory_space<vmem>>, vector<1x32xf32>
    %11 = vector.broadcast %10 : vector<1x32xf32> to vector<16x32xf32>
    %12 = arith.addf %9, %11 : vector<16x32xf32>
    %c0_11 = arith.constant 0 : index
    %c0_12 = arith.constant 0 : index
    %13 = vector.load %arg6[%c0_11, %c0_12] : memref<16x32xf32, #tpu.memory_space<vmem>>, vector<16x32xf32>
    tpu.vector_store %arg6[%c0_11, %c0_12], %12 {strides = array<i32>} : memref<16x32xf32, #tpu.memory_space<vmem>>, vector<16x32xf32>,
    return
  }
  func.func @transform_0(%arg0: i32) -> (i32, i32) {
    %c0_i32 = arith.constant 0 : i32
    %c0_i32_0 = arith.constant 0 : i32
    return %arg0, %c0_i32 : i32, i32
  }
  func.func @transform_1(%arg0: i32) -> (i32, i32) {
    %c0_i32 = arith.constant 0 : i32
    %c0_i32_0 = arith.constant 0 : i32
    %c0_i32_1 = arith.constant 0 : i32
    return %c0_i32, %c0_i32_0 : i32, i32
  }
  func.func @transform_2(%arg0: i32) -> (i32, i32) {
    %c0_i32 = arith.constant 0 : i32
    %c0_i32_0 = arith.constant 0 : i32
    %c0_i32_1 = arith.constant 0 : i32
    return %c0_i32, %c0_i32_0 : i32, i32
  }
  func.func @transform_3(%arg0: i32) -> (i32, i32) {
    %c0_i32 = arith.constant 0 : i32
    %c0_i32_0 = arith.constant 0 : i32
    %c0_i32_1 = arith.constant 0 : i32
    return %c0_i32, %c0_i32_0 : i32, i32
  }
  func.func @transform_4(%arg0: i32) -> (i32, i32) {
    %c0_i32 = arith.constant 0 : i32
    %c0_i32_0 = arith.constant 0 : i32
    %c0_i32_1 = arith.constant 0 : i32
    return %c0_i32, %c0_i32_0 : i32, i32
  }
  func.func @transform_5(%arg0: i32) -> (i32, i32) {
    %c0_i32 = arith.constant 0 : i32
    %c0_i32_0 = arith.constant 0 : i32
    return %arg0, %c0_i32 : i32, i32
  }
}

module attributes {stable_mosaic.version = 11 : i64} {
  func.func @kernel(%arg0: i32, %arg1: memref<16x32xf32, #tpu.memory_space<vmem>>, %arg2: memref<32x64xf32, #tpu.memory_space<vmem>>, %arg3: memref<1x64xf32, #tpu.memory_space<vmem>>, %arg4: memref<64x32xf32, #tpu.memory_space<vmem>>, %arg5: memref<1x32xf32, #tpu.memory_space<vmem>>, %arg6: memref<16x32xf32, #tpu.memory_space<vmem>>) attributes {dimension_semantics = [#tpu.dimension_semantics<parallel>], iteration_bounds = array<i64: 1>, scalar_prefetch = 0 : i64, scratch_operands = 0 : i64, tpu.core_type = #tpu.core_type<tc>, window_params = [{transform_indices = @transform_0, window_bounds = array<i64: 16, 32>}, {pipeline_mode = #tpu.pipeline_mode<synchronous>, transform_indices = @transform_1, window_bounds = array<i64: 32, 64>}, {pipeline_mode = #tpu.pipeline_mode<synchronous>, transform_indices = @transform_2, window_bounds = array<i64: 1, 64>}, {pipeline_mode = #tpu.pipeline_mode<synchronous>, transform_indices = @transform_3, window_bounds = array<i64: 64, 32>}, {pipeline_mode = #tpu.pipeline_mode<synchronous>, transform_indices = @transform_4, window_bounds = array<i64: 1, 32>}, {transform_indices = @transform_5, window_bounds = array<i64: 16, 32>}]} {
    %c0 = arith.constant 0 : index
    %c0_0 = arith.constant 0 : index
    %0 = vector.load %arg1[%c0, %c0_0] : memref<16x32xf32, #tpu.memory_space<vmem>>, vector<16x32xf32>
    %c0_1 = arith.constant 0 : index
    %c0_2 = arith.constant 0 : index
    %1 = vector.load %arg2[%c0_1, %c0_2] : memref<32x64xf32, #tpu.memory_space<vmem>>, vector<32x64xf32>
    %cst = arith.constant dense<0.000000e+00> : vector<16x64xf32>
    %2 = tpu.matmul %0, %1, %cst {dimension_numbers = #tpu.dot_dimension_numbers<[1], [0], [0], [1], [0, 0, 1, 1], [], []>} : vector<16x32xf32>, vector<32x64xf32>, vector<16x64xf32> -> vector<16x64xf32>
    %c0_3 = arith.constant 0 : index
    %c0_4 = arith.constant 0 : index
    %3 = vector.load %arg3[%c0_3, %c0_4] : memref<1x64xf32, #tpu.memory_space<vmem>>, vector<1x64xf32>
    %4 = vector.broadcast %3 : vector<1x64xf32> to vector<16x64xf32>
    %5 = arith.addf %2, %4 : vector<16x64xf32>
    %cst_5 = arith.constant 0.000000e+00 : f32
    %6 = vector.broadcast %cst_5 : f32 to vector<16x64xf32>
    %7 = arith.maximumf %5, %6 : vector<16x64xf32>
    %c0_6 = arith.constant 0 : index
    %c0_7 = arith.constant 0 : index
    %8 = vector.load %arg4[%c0_6, %c0_7] : memref<64x32xf32, #tpu.memory_space<vmem>>, vector<64x32xf32>
    %cst_8 = arith.constant dense<0.000000e+00> : vector<16x32xf32>
    %9 = tpu.matmul %7, %8, %cst_8 {dimension_numbers = #tpu.dot_dimension_numbers<[1], [0], [0], [1], [0, 0, 1, 1], [], []>} : vector<16x64xf32>, vector<64x32xf32>, vector<16x32xf32> -> vector<16x32xf32>
    %c0_9 = arith.constant 0 : index
    %c0_10 = arith.constant 0 : index
    %10 = vector.load %arg5[%c0_9, %c0_10] : memref<1x32xf32, #tpu.memory_space<vmem>>, vector<1x32xf32>
    %11 = vector.broadcast %10 : vector<1x32xf32> to vector<16x32xf32>
    %12 = arith.addf %9, %11 : vector<16x32xf32>
    %c0_11 = arith.constant 0 : index
    %c0_12 = arith.constant 0 : index
    %13 = vector.load %arg6[%c0_11, %c0_12] : memref<16x32xf32, #tpu.memory_space<vmem>>, vector<16x32xf32>
    tpu.vector_store %arg6[%c0_11, %c0_12], %12 {strides = array<i32>} : memref<16x32xf32, #tpu.memory_space<vmem>>, vector<16x32xf32>,
    return
  }
  func.func @transform_0(%arg0: i32) -> (i32, i32) {
    %c0_i32 = arith.constant 0 : i32
    %c0_i32_0 = arith.constant 0 : i32
    return %arg0, %c0_i32 : i32, i32
  }
  func.func @transform_1(%arg0: i32) -> (i32, i32) {
    %c0_i32 = arith.constant 0 : i32
    %c0_i32_0 = arith.constant 0 : i32
    %c0_i32_1 = arith.constant 0 : i32
    return %c0_i32, %c0_i32_0 : i32, i32
  }
  func.func @transform_2(%arg0: i32) -> (i32, i32) {
    %c0_i32 = arith.constant 0 : i32
    %c0_i32_0 = arith.constant 0 : i32
    %c0_i32_1 = arith.constant 0 : i32
    return %c0_i32, %c0_i32_0 : i32, i32
  }
  func.func @transform_3(%arg0: i32) -> (i32, i32) {
    %c0_i32 = arith.constant 0 : i32
    %c0_i32_0 = arith.constant 0 : i32
    %c0_i32_1 = arith.constant 0 : i32
    return %c0_i32, %c0_i32_0 : i32, i32
  }
  func.func @transform_4(%arg0: i32) -> (i32, i32) {
    %c0_i32 = arith.constant 0 : i32
    %c0_i32_0 = arith.constant 0 : i32
    %c0_i32_1 = arith.constant 0 : i32
    return %c0_i32, %c0_i32_0 : i32, i32
  }
  func.func @transform_5(%arg0: i32) -> (i32, i32) {
    %c0_i32 = arith.constant 0 : i32
    %c0_i32_0 = arith.constant 0 : i32
    return %arg0, %c0_i32 : i32, i32
  }
}

</mosaic_0001>

<llo_original>
// kernel: tpu_custom_call.1
$region0: #{tpu_custom_call.1}
  #allocation0 [shape = 'u32[]', space=smem, size = 0x4, offset = 0x4, fixed_abs, tag = 'smem constant byte address 0x4 - core index']
  #allocation1 [shape = 'u32[144,128]{1,0:T(1,128)}', space=vmem, size = 0x12000, scoped, tag = 'internal scratch']
  %s0 = inlined_call_operand.vmem [shape: f32[16,32], index: 0, kind: input, shape index: {}]
  %s1 = inlined_call_operand.vmem [shape: f32[32,64], index: 1, kind: input, shape index: {}]
  %s2 = inlined_call_operand.vmem [shape: f32[1,64], index: 2, kind: input, shape index: {}]
  %s3 = inlined_call_operand.vmem [shape: f32[64,32], index: 3, kind: input, shape index: {}]
  %s4 = inlined_call_operand.vmem [shape: f32[1,32], index: 4, kind: input, shape index: {}]
  %s5 = inlined_call_operand.hbm [shape: f32[16,32], index: 5, kind: output, shape index: {}]
  %s6 = sld [smem:[#allocation0]]
  $region30: #{tpu_custom_call.1} parent=0
    _
  %s8 = ssub.s32 1, %s6
  %s9 = scalar_select 0, %s8, %s6
  $region1: #{tpu_custom_call.1} parent=0
    #allocation2 [shape = 'u8[8192]{0}', space=vmem, size = 0x2000, scoped, tag = 'output window, operand 0, single buffered']
    #allocation3 [shape = 's32[1]{0}', space=sflag, size = 0x4, scoped, tag = 'scoped memory for tpu_custom_call.1']
    %10 = vsyncpa [#allocation3], 0
    // Predicated region
    $region2: #{tpu_custom_call.1} parent=1 // pred_check
      _
    $region3: #{tpu_custom_call.1} parent=1 // pred_check_branch
      %12 = sbr.rel (0) target = $region5
    $region4: #{tpu_custom_call.1} parent=1 // pred_region
      _
    $region5: #{tpu_custom_call.1} parent=1 // pred_fallthru
      _
    // Predicated region
    $region6: #{tpu_custom_call.1} parent=1 // pred_check
      _
    $region7: #{tpu_custom_call.1} parent=1 // pred_check_branch
      %14 = sbr.rel (0) target = $region9
    $region8: #{tpu_custom_call.1} parent=1 // pred_region
      _
    $region9: #{tpu_custom_call.1} parent=1 // pred_fallthru
      _
    // Predicated region
    $region10: #{tpu_custom_call.1} parent=1 // pred_check
      _
    $region11: #{tpu_custom_call.1} parent=1 // pred_check_branch
      %16 = sbr.rel (0) target = $region13
    $region12: #{tpu_custom_call.1} parent=1 // pred_region
      _
    $region13: #{tpu_custom_call.1} parent=1 // pred_fallthru
      _
    // Predicated region
    $region14: #{tpu_custom_call.1} parent=1 // pred_check
      _
    $region15: #{tpu_custom_call.1} parent=1 // pred_check_branch
      %18 = sbr.rel (0) target = $region17
    $region16: #{tpu_custom_call.1} parent=1 // pred_region
      _
    $region17: #{tpu_custom_call.1} parent=1 // pred_fallthru
      _
    // Predicated region
    $region18: #{tpu_custom_call.1} parent=1 // pred_check
      _
    $region19: #{tpu_custom_call.1} parent=1 // pred_check_branch
      %20 = sbr.rel (0) target = $region21
    $region20: #{tpu_custom_call.1} parent=1 // pred_region
      _
    $region21: #{tpu_custom_call.1} parent=1 // pred_fallthru
      _
    %v21 = vld [vmem:[%s0] sm:$0xff]
    %v22 = vld [vmem:[%s0 + $0x8] sm:$0xff]
    %v23 = vld [vmem:[%s1] sm:$0xff]
    %v24 = vld [vmem:[%s1 + $0x8] sm:$0xff]
    %v25 = vld [vmem:[%s1 + $0x10] sm:$0xff]
    %v26 = vld [vmem:[%s1 + $0x18] sm:$0xff]
    %v27 = vld [vmem:[%s2] sm:$0x1]
    %v29 = vlaneseq
    %v30 = vshrl.u32 %v29, 7
    %v31 = vsub.s32 0, %v30
    %v32 = vrot.slane %v27, %v31
    %vm34 = vcmask 261120
    %v36 = vsel %vm34, %v21, 0
    %v39 = vsel %vm34, %v22, 0
    %41 = vmatprep.subr.mxu0 0.0
    %42 = vmatpush1.msra.mxu0 0.0
    %43 = vmatprep.subr.mxu0 0.0
    %44 = vmatpush1.msra.mxu0 0.0
    %45 = vmatprep.subr.mxu0 0.0
    %46 = vmatpush1.msra.mxu0 0.0
    %47 = vmatprep.subr.mxu0 0.0
    %48 = vmatpush1.msra.mxu0 0.0
    %49 = vmatprep.subr.mxu0 0.0
    %50 = vmatpush1.msra.mxu0 0.0
    %51 = vmatprep.subr.mxu0 0.0
    %52 = vmatpush1.msra.mxu0 0.0
    %53 = vmatprep.subr.mxu0 0.0
    %54 = vmatpush1.msra.mxu0 0.0
    %55 = vmatprep.subr.mxu0 0.0
    %56 = vmatpush1.msra.mxu0 0.0
    %57 = vmatprep.subr.mxu0 0.0
    %58 = vmatpush1.msra.mxu0 0.0
    %59 = vmatprep.subr.mxu0 0.0
    %60 = vmatpush1.msra.mxu0 0.0
    %61 = vmatprep.subr.mxu0 0.0
    %62 = vmatpush1.msra.mxu0 0.0
    %63 = vmatprep.subr.mxu0 0.0
    %64 = vmatpush1.msra.mxu0 0.0
    %65 = vmatprep.subr.mxu0 0.0
    %66 = vmatpush1.msra.mxu0 %v26
    %67 = vmatprep.subr.mxu0 0.0
    %68 = vmatpush1.msra.mxu0 %v25
    %69 = vmatprep.subr.mxu0 0.0
    %70 = vmatpush1.msra.mxu0 %v24
    %71 = vmatprep.subr.mxu0 0.0
    %72 = vmatpush1.msra.mxu0 %v23
    %73 = vmatprep.subr.mxu0 0.0
    %74 = vmatpush2.msra.mxu0 0.0
    %75 = vmatprep.subr.mxu0 0.0
    %76 = vmatpush2.msra.mxu0 0.0
    %77 = vmatprep.subr.mxu0 0.0
    %78 = vmatpush2.msra.mxu0 0.0
    %79 = vmatprep.subr.mxu0 0.0
    %80 = vmatpush2.msra.mxu0 0.0
    %81 = vmatprep.subr.mxu0 0.0
    %82 = vmatpush2.msra.mxu0 0.0
    %83 = vmatprep.subr.mxu0 0.0
    %84 = vmatpush2.msra.mxu0 0.0
    %85 = vmatprep.subr.mxu0 0.0
    %86 = vmatpush2.msra.mxu0 0.0
    %87 = vmatprep.subr.mxu0 0.0
    %88 = vmatpush2.msra.mxu0 0.0
    %89 = vmatprep.subr.mxu0 0.0
    %90 = vmatpush2.msra.mxu0 0.0
    %91 = vmatprep.subr.mxu0 0.0
    %92 = vmatpush2.msra.mxu0 0.0
    %93 = vmatprep.subr.mxu0 0.0
    %94 = vmatpush2.msra.mxu0 0.0
    %95 = vmatprep.subr.mxu0 0.0
    %96 = vmatpush2.msra.mxu0 0.0
    %97 = vmatprep.subr.mxu0 0.0
    %98 = vmatpush2.msra.mxu0 0.0
    %99 = vmatprep.subr.mxu0 0.0
    %100 = vmatpush2.msra.mxu0 0.0
    %101 = vmatprep.subr.mxu0 0.0
    %102 = vmatpush2.msra.mxu0 0.0
    %103 = vmatprep.subr.mxu0 0.0
    %104 = vmatpush2.msra.mxu0 0.0
    %105 = vmatprep.mubr.f32.mxu0 0.0
    %106 = vmatmul.mubr.f32.gmra.mxu0 %v36
    %v107 = vpop.f32.mrf.mxu0
    %v108 = vadd.f32 %v32, %v107
    %v109 = vpop.f32.mrf.mxu0
    %110 = vmatprep.mubr.f32.mxu0 0.0
    %111 = vmatmul.mubr.f32.gmra.mxu0 %v39
    %v112 = vpop.f32.mrf.mxu0
    %v113 = vadd.f32 %v32, %v112
    %v114 = vpop.f32.mrf.mxu0
    %115 = vdwg.mxu0
    %v116 = vmax.f32 %v108, 0.0
    %v117 = vmax.f32 %v113, 0.0
    %v118 = vld [vmem:[%s3] sm:$0xff]
    %v119 = vld [vmem:[%s3 + $0x8] sm:$0xff]
    %v120 = vld [vmem:[%s3 + $0x10] sm:$0xff]
    %v121 = vld [vmem:[%s3 + $0x18] sm:$0xff]
    %v122 = vld [vmem:[%s3 + $0x20] sm:$0xff]
    %v123 = vld [vmem:[%s3 + $0x28] sm:$0xff]
    %v124 = vld [vmem:[%s3 + $0x30] sm:$0xff]
    %v125 = vld [vmem:[%s3 + $0x38] sm:$0xff]
    %v126 = vld [vmem:[%s4] sm:$0x1]
    %v128 = vlaneseq
    %v129 = vshrl.u32 %v128, 7
    %v130 = vsub.s32 0, %v129
    %v131 = vrot.slane %v126, %v130
    %vm133 = vcmask 523264
    %v135 = vsel %vm133, %v116, 0
    %v138 = vsel %vm133, %v117, 0
    %140 = vmatprep.subr.mxu0 0.0
    %141 = vmatpush1.msra.mxu0 0.0
    %142 = vmatprep.subr.mxu0 0.0
    %143 = vmatpush1.msra.mxu0 0.0
    %144 = vmatprep.subr.mxu0 0.0
    %145 = vmatpush1.msra.mxu0 0.0
    %146 = vmatprep.subr.mxu0 0.0
    %147 = vmatpush1.msra.mxu0 0.0
    %148 = vmatprep.subr.mxu0 0.0
    %149 = vmatpush1.msra.mxu0 0.0
    %150 = vmatprep.subr.mxu0 0.0
    %151 = vmatpush1.msra.mxu0 0.0
    %152 = vmatprep.subr.mxu0 0.0
    %153 = vmatpush1.msra.mxu0 0.0
    %154 = vmatprep.subr.mxu0 0.0
    %155 = vmatpush1.msra.mxu0 0.0
    %156 = vmatprep.subr.mxu0 0.0
    %157 = vmatpush1.msra.mxu0 %v125
    %158 = vmatprep.subr.mxu0 0.0
    %159 = vmatpush1.msra.mxu0 %v124
    %160 = vmatprep.subr.mxu0 0.0
    %161 = vmatpush1.msra.mxu0 %v123
    %162 = vmatprep.subr.mxu0 0.0
    %163 = vmatpush1.msra.mxu0 %v122
    %164 = vmatprep.subr.mxu0 0.0
    %165 = vmatpush1.msra.mxu0 %v121
    %166 = vmatprep.subr.mxu0 0.0
    %167 = vmatpush1.msra.mxu0 %v120
    %168 = vmatprep.subr.mxu0 0.0
    %169 = vmatpush1.msra.mxu0 %v119
    %170 = vmatprep.subr.mxu0 0.0
    %171 = vmatpush1.msra.mxu0 %v118
    %172 = vmatprep.subr.mxu0 0.0
    %173 = vmatpush2.msra.mxu0 0.0
    %174 = vmatprep.subr.mxu0 0.0
    %175 = vmatpush2.msra.mxu0 0.0
    %176 = vmatprep.subr.mxu0 0.0
    %177 = vmatpush2.msra.mxu0 0.0
    %178 = vmatprep.subr.mxu0 0.0
    %179 = vmatpush2.msra.mxu0 0.0
    %180 = vmatprep.subr.mxu0 0.0
    %181 = vmatpush2.msra.mxu0 0.0
    %182 = vmatprep.subr.mxu0 0.0
    %183 = vmatpush2.msra.mxu0 0.0
    %184 = vmatprep.subr.mxu0 0.0
    %185 = vmatpush2.msra.mxu0 0.0
    %186 = vmatprep.subr.mxu0 0.0
    %187 = vmatpush2.msra.mxu0 0.0
    %188 = vmatprep.subr.mxu0 0.0
    %189 = vmatpush2.msra.mxu0 0.0
    %190 = vmatprep.subr.mxu0 0.0
    %191 = vmatpush2.msra.mxu0 0.0
    %192 = vmatprep.subr.mxu0 0.0
    %193 = vmatpush2.msra.mxu0 0.0
    %194 = vmatprep.subr.mxu0 0.0
    %195 = vmatpush2.msra.mxu0 0.0
    %196 = vmatprep.subr.mxu0 0.0
    %197 = vmatpush2.msra.mxu0 0.0
    %198 = vmatprep.subr.mxu0 0.0
    %199 = vmatpush2.msra.mxu0 0.0
    %200 = vmatprep.subr.mxu0 0.0
    %201 = vmatpush2.msra.mxu0 0.0
    %202 = vmatprep.subr.mxu0 0.0
    %203 = vmatpush2.msra.mxu0 0.0
    %204 = vmatprep.mubr.f32.mxu0 0.0
    %205 = vmatmul.mubr.f32.gmra.mxu0 %v135
    %v206 = vpop.f32.mrf.mxu0
    %v207 = vadd.f32 %v131, %v206
    %v208 = vpop.f32.mrf.mxu0
    %209 = vmatprep.mubr.f32.mxu0 0.0
    %210 = vmatmul.mubr.f32.gmra.mxu0 %v138
    %v211 = vpop.f32.mrf.mxu0
    %v212 = vadd.f32 %v131, %v211
    %v213 = vpop.f32.mrf.mxu0
    %214 = vdwg.mxu0
    %215 = vst.msk [vmem:[#allocation2] sm:$0xff] %vm34, %v207
    %216 = vst.msk [vmem:[#allocation2 + $0x8] sm:$0xff] %vm34, %v212
    // Predicated region
    $region22: #{tpu_custom_call.1} parent=1 // pred_check
      _
    $region23: #{tpu_custom_call.1} parent=1 // pred_check_branch
      %218 = sbr.rel (0) target = $region25
    $region24: #{tpu_custom_call.1} parent=1 // pred_region
      %s220 = ssub.s32 256, 256
      %221 = vsyncadd [#allocation3], %s220
      %s222 = sshll.u32 [#allocation2], 4
      %s223 = int_to_ptr.vmem [resolvable:$true] %s222
      %228 = dma.vmem_to_hbm [thread:$0]  %s223, 256, %s5, [#allocation3], 128, 128, 8
    $region25: #{tpu_custom_call.1} parent=1 // pred_fallthru
      _
    // Predicated region
    $region26: #{tpu_custom_call.1} parent=1 // pred_check
      _
    $region27: #{tpu_custom_call.1} parent=1 // pred_check_branch
      %230 = sbr.rel (0) target = $region29
    $region28: #{tpu_custom_call.1} parent=1 // pred_region
      %231 = dma.done [#allocation3], 256
    $region29: #{tpu_custom_call.1} parent=1 // pred_fallthru
      _
    %232 = vsyncpa [#allocation3], 1

// kernel: tpu_custom_call.1
$region0: #{tpu_custom_call.1}
  #allocation0 [shape = 'u32[]', space=smem, size = 0x4, offset = 0x4, fixed_abs, tag = 'smem constant byte address 0x4 - core index']
  #allocation1 [shape = 'u32[144,128]{1,0:T(1,128)}', space=vmem, size = 0x12000, scoped, tag = 'internal scratch']
  %s0 = inlined_call_operand.vmem [shape: f32[16,32], index: 0, kind: input, shape index: {}]
  %s1 = inlined_call_operand.vmem [shape: f32[32,64], index: 1, kind: input, shape index: {}]
  %s2 = inlined_call_operand.vmem [shape: f32[1,64], index: 2, kind: input, shape index: {}]
  %s3 = inlined_call_operand.vmem [shape: f32[64,32], index: 3, kind: input, shape index: {}]
  %s4 = inlined_call_operand.vmem [shape: f32[1,32], index: 4, kind: input, shape index: {}]
  %s5 = inlined_call_operand.hbm [shape: f32[16,32], index: 5, kind: output, shape index: {}]
  %s6 = sld [smem:[#allocation0]]
  $region30: #{tpu_custom_call.1} parent=0
    _
  %s8 = ssub.s32 1, %s6
  %s9 = scalar_select 0, %s8, %s6
  $region1: #{tpu_custom_call.1} parent=0
    #allocation2 [shape = 'u8[8192]{0}', space=vmem, size = 0x2000, scoped, tag = 'output window, operand 0, single buffered']
    #allocation3 [shape = 's32[1]{0}', space=sflag, size = 0x4, scoped, tag = 'scoped memory for tpu_custom_call.1']
    %10 = vsyncpa [#allocation3], 0
    // Predicated region
    $region2: #{tpu_custom_call.1} parent=1 // pred_check
      _
    $region3: #{tpu_custom_call.1} parent=1 // pred_check_branch
      %12 = sbr.rel (0) target = $region5
    $region4: #{tpu_custom_call.1} parent=1 // pred_region
      _
    $region5: #{tpu_custom_call.1} parent=1 // pred_fallthru
      _
    // Predicated region
    $region6: #{tpu_custom_call.1} parent=1 // pred_check
      _
    $region7: #{tpu_custom_call.1} parent=1 // pred_check_branch
      %14 = sbr.rel (0) target = $region9
    $region8: #{tpu_custom_call.1} parent=1 // pred_region
      _
    $region9: #{tpu_custom_call.1} parent=1 // pred_fallthru
      _
    // Predicated region
    $region10: #{tpu_custom_call.1} parent=1 // pred_check
      _
    $region11: #{tpu_custom_call.1} parent=1 // pred_check_branch
      %16 = sbr.rel (0) target = $region13
    $region12: #{tpu_custom_call.1} parent=1 // pred_region
      _
    $region13: #{tpu_custom_call.1} parent=1 // pred_fallthru
      _
    // Predicated region
    $region14: #{tpu_custom_call.1} parent=1 // pred_check
      _
    $region15: #{tpu_custom_call.1} parent=1 // pred_check_branch
      %18 = sbr.rel (0) target = $region17
    $region16: #{tpu_custom_call.1} parent=1 // pred_region
      _
    $region17: #{tpu_custom_call.1} parent=1 // pred_fallthru
      _
    // Predicated region
    $region18: #{tpu_custom_call.1} parent=1 // pred_check
      _
    $region19: #{tpu_custom_call.1} parent=1 // pred_check_branch
      %20 = sbr.rel (0) target = $region21
    $region20: #{tpu_custom_call.1} parent=1 // pred_region
      _
    $region21: #{tpu_custom_call.1} parent=1 // pred_fallthru
      _
    %v21 = vld [vmem:[%s0] sm:$0xff]
    %v22 = vld [vmem:[%s0 + $0x8] sm:$0xff]
    %v23 = vld [vmem:[%s1] sm:$0xff]
    %v24 = vld [vmem:[%s1 + $0x8] sm:$0xff]
    %v25 = vld [vmem:[%s1 + $0x10] sm:$0xff]
    %v26 = vld [vmem:[%s1 + $0x18] sm:$0xff]
    %v27 = vld [vmem:[%s2] sm:$0x1]
    %v29 = vlaneseq
    %v30 = vshrl.u32 %v29, 7
    %v31 = vsub.s32 0, %v30
    %v32 = vrot.slane %v27, %v31
    %vm34 = vcmask 261120
    %v36 = vsel %vm34, %v21, 0
    %v39 = vsel %vm34, %v22, 0
    %41 = vmatprep.subr.mxu0 0.0
    %42 = vmatpush1.msra.mxu0 0.0
    %43 = vmatprep.subr.mxu0 0.0
    %44 = vmatpush1.msra.mxu0 0.0
    %45 = vmatprep.subr.mxu0 0.0
    %46 = vmatpush1.msra.mxu0 0.0
    %47 = vmatprep.subr.mxu0 0.0
    %48 = vmatpush1.msra.mxu0 0.0
    %49 = vmatprep.subr.mxu0 0.0
    %50 = vmatpush1.msra.mxu0 0.0
    %51 = vmatprep.subr.mxu0 0.0
    %52 = vmatpush1.msra.mxu0 0.0
    %53 = vmatprep.subr.mxu0 0.0
    %54 = vmatpush1.msra.mxu0 0.0
    %55 = vmatprep.subr.mxu0 0.0
    %56 = vmatpush1.msra.mxu0 0.0
    %57 = vmatprep.subr.mxu0 0.0
    %58 = vmatpush1.msra.mxu0 0.0
    %59 = vmatprep.subr.mxu0 0.0
    %60 = vmatpush1.msra.mxu0 0.0
    %61 = vmatprep.subr.mxu0 0.0
    %62 = vmatpush1.msra.mxu0 0.0
    %63 = vmatprep.subr.mxu0 0.0
    %64 = vmatpush1.msra.mxu0 0.0
    %65 = vmatprep.subr.mxu0 0.0
    %66 = vmatpush1.msra.mxu0 %v26
    %67 = vmatprep.subr.mxu0 0.0
    %68 = vmatpush1.msra.mxu0 %v25
    %69 = vmatprep.subr.mxu0 0.0
    %70 = vmatpush1.msra.mxu0 %v24
    %71 = vmatprep.subr.mxu0 0.0
    %72 = vmatpush1.msra.mxu0 %v23
    %73 = vmatprep.subr.mxu0 0.0
    %74 = vmatpush2.msra.mxu0 0.0
    %75 = vmatprep.subr.mxu0 0.0
    %76 = vmatpush2.msra.mxu0 0.0
    %77 = vmatprep.subr.mxu0 0.0
    %78 = vmatpush2.msra.mxu0 0.0
    %79 = vmatprep.subr.mxu0 0.0
    %80 = vmatpush2.msra.mxu0 0.0
    %81 = vmatprep.subr.mxu0 0.0
    %82 = vmatpush2.msra.mxu0 0.0
    %83 = vmatprep.subr.mxu0 0.0
    %84 = vmatpush2.msra.mxu0 0.0
    %85 = vmatprep.subr.mxu0 0.0
    %86 = vmatpush2.msra.mxu0 0.0
    %87 = vmatprep.subr.mxu0 0.0
    %88 = vmatpush2.msra.mxu0 0.0
    %89 = vmatprep.subr.mxu0 0.0
    %90 = vmatpush2.msra.mxu0 0.0
    %91 = vmatprep.subr.mxu0 0.0
    %92 = vmatpush2.msra.mxu0 0.0
    %93 = vmatprep.subr.mxu0 0.0
    %94 = vmatpush2.msra.mxu0 0.0
    %95 = vmatprep.subr.mxu0 0.0
    %96 = vmatpush2.msra.mxu0 0.0
    %97 = vmatprep.subr.mxu0 0.0
    %98 = vmatpush2.msra.mxu0 0.0
    %99 = vmatprep.subr.mxu0 0.0
    %100 = vmatpush2.msra.mxu0 0.0
    %101 = vmatprep.subr.mxu0 0.0
    %102 = vmatpush2.msra.mxu0 0.0
    %103 = vmatprep.subr.mxu0 0.0
    %104 = vmatpush2.msra.mxu0 0.0
    %105 = vmatprep.mubr.f32.mxu0 0.0
    %106 = vmatmul.mubr.f32.gmra.mxu0 %v36
    %v107 = vpop.f32.mrf.mxu0
    %v108 = vadd.f32 %v32, %v107
    %v109 = vpop.f32.mrf.mxu0
    %110 = vmatprep.mubr.f32.mxu0 0.0
    %111 = vmatmul.mubr.f32.gmra.mxu0 %v39
    %v112 = vpop.f32.mrf.mxu0
    %v113 = vadd.f32 %v32, %v112
    %v114 = vpop.f32.mrf.mxu0
    %115 = vdwg.mxu0
    %v116 = vmax.f32 %v108, 0.0
    %v117 = vmax.f32 %v113, 0.0
    %v118 = vld [vmem:[%s3] sm:$0xff]
    %v119 = vld [vmem:[%s3 + $0x8] sm:$0xff]
    %v120 = vld [vmem:[%s3 + $0x10] sm:$0xff]
    %v121 = vld [vmem:[%s3 + $0x18] sm:$0xff]
    %v122 = vld [vmem:[%s3 + $0x20] sm:$0xff]
    %v123 = vld [vmem:[%s3 + $0x28] sm:$0xff]
    %v124 = vld [vmem:[%s3 + $0x30] sm:$0xff]
    %v125 = vld [vmem:[%s3 + $0x38] sm:$0xff]
    %v126 = vld [vmem:[%s4] sm:$0x1]
    %v128 = vlaneseq
    %v129 = vshrl.u32 %v128, 7
    %v130 = vsub.s32 0, %v129
    %v131 = vrot.slane %v126, %v130
    %vm133 = vcmask 523264
    %v135 = vsel %vm133, %v116, 0
    %v138 = vsel %vm133, %v117, 0
    %140 = vmatprep.subr.mxu0 0.0
    %141 = vmatpush1.msra.mxu0 0.0
    %142 = vmatprep.subr.mxu0 0.0
    %143 = vmatpush1.msra.mxu0 0.0
    %144 = vmatprep.subr.mxu0 0.0
    %145 = vmatpush1.msra.mxu0 0.0
    %146 = vmatprep.subr.mxu0 0.0
    %147 = vmatpush1.msra.mxu0 0.0
    %148 = vmatprep.subr.mxu0 0.0
    %149 = vmatpush1.msra.mxu0 0.0
    %150 = vmatprep.subr.mxu0 0.0
    %151 = vmatpush1.msra.mxu0 0.0
    %152 = vmatprep.subr.mxu0 0.0
    %153 = vmatpush1.msra.mxu0 0.0
    %154 = vmatprep.subr.mxu0 0.0
    %155 = vmatpush1.msra.mxu0 0.0
    %156 = vmatprep.subr.mxu0 0.0
    %157 = vmatpush1.msra.mxu0 %v125
    %158 = vmatprep.subr.mxu0 0.0
    %159 = vmatpush1.msra.mxu0 %v124
    %160 = vmatprep.subr.mxu0 0.0
    %161 = vmatpush1.msra.mxu0 %v123
    %162 = vmatprep.subr.mxu0 0.0
    %163 = vmatpush1.msra.mxu0 %v122
    %164 = vmatprep.subr.mxu0 0.0
    %165 = vmatpush1.msra.mxu0 %v121
    %166 = vmatprep.subr.mxu0 0.0
    %167 = vmatpush1.msra.mxu0 %v120
    %168 = vmatprep.subr.mxu0 0.0
    %169 = vmatpush1.msra.mxu0 %v119
    %170 = vmatprep.subr.mxu0 0.0
    %171 = vmatpush1.msra.mxu0 %v118
    %172 = vmatprep.subr.mxu0 0.0
    %173 = vmatpush2.msra.mxu0 0.0
    %174 = vmatprep.subr.mxu0 0.0
    %175 = vmatpush2.msra.mxu0 0.0
    %176 = vmatprep.subr.mxu0 0.0
    %177 = vmatpush2.msra.mxu0 0.0
    %178 = vmatprep.subr.mxu0 0.0
    %179 = vmatpush2.msra.mxu0 0.0
    %180 = vmatprep.subr.mxu0 0.0
    %181 = vmatpush2.msra.mxu0 0.0
    %182 = vmatprep.subr.mxu0 0.0
    %183 = vmatpush2.msra.mxu0 0.0
    %184 = vmatprep.subr.mxu0 0.0
    %185 = vmatpush2.msra.mxu0 0.0
    %186 = vmatprep.subr.mxu0 0.0
    %187 = vmatpush2.msra.mxu0 0.0
    %188 = vmatprep.subr.mxu0 0.0
    %189 = vmatpush2.msra.mxu0 0.0
    %190 = vmatprep.subr.mxu0 0.0
    %191 = vmatpush2.msra.mxu0 0.0
    %192 = vmatprep.subr.mxu0 0.0
    %193 = vmatpush2.msra.mxu0 0.0
    %194 = vmatprep.subr.mxu0 0.0
    %195 = vmatpush2.msra.mxu0 0.0
    %196 = vmatprep.subr.mxu0 0.0
    %197 = vmatpush2.msra.mxu0 0.0
    %198 = vmatprep.subr.mxu0 0.0
    %199 = vmatpush2.msra.mxu0 0.0
    %200 = vmatprep.subr.mxu0 0.0
    %201 = vmatpush2.msra.mxu0 0.0
    %202 = vmatprep.subr.mxu0 0.0
    %203 = vmatpush2.msra.mxu0 0.0
    %204 = vmatprep.mubr.f32.mxu0 0.0
    %205 = vmatmul.mubr.f32.gmra.mxu0 %v135
    %v206 = vpop.f32.mrf.mxu0
    %v207 = vadd.f32 %v131, %v206
    %v208 = vpop.f32.mrf.mxu0
    %209 = vmatprep.mubr.f32.mxu0 0.0
    %210 = vmatmul.mubr.f32.gmra.mxu0 %v138
    %v211 = vpop.f32.mrf.mxu0
    %v212 = vadd.f32 %v131, %v211
    %v213 = vpop.f32.mrf.mxu0
    %214 = vdwg.mxu0
    %215 = vst.msk [vmem:[#allocation2] sm:$0xff] %vm34, %v207
    %216 = vst.msk [vmem:[#allocation2 + $0x8] sm:$0xff] %vm34, %v212
    // Predicated region
    $region22: #{tpu_custom_call.1} parent=1 // pred_check
      _
    $region23: #{tpu_custom_call.1} parent=1 // pred_check_branch
      %218 = sbr.rel (0) target = $region25
    $region24: #{tpu_custom_call.1} parent=1 // pred_region
      %s220 = ssub.s32 256, 256
      %221 = vsyncadd [#allocation3], %s220
      %s222 = sshll.u32 [#allocation2], 4
      %s223 = int_to_ptr.vmem [resolvable:$true] %s222
      %228 = dma.vmem_to_hbm [thread:$0]  %s223, 256, %s5, [#allocation3], 128, 128, 8
    $region25: #{tpu_custom_call.1} parent=1 // pred_fallthru
      _
    // Predicated region
    $region26: #{tpu_custom_call.1} parent=1 // pred_check
      _
    $region27: #{tpu_custom_call.1} parent=1 // pred_check_branch
      %230 = sbr.rel (0) target = $region29
    $region28: #{tpu_custom_call.1} parent=1 // pred_region
      %231 = dma.done [#allocation3], 256
    $region29: #{tpu_custom_call.1} parent=1 // pred_fallthru
      _
    %232 = vsyncpa [#allocation3], 1

</llo_original>
